<compile_context>
chip_gen: v7x
topology: tpu7x:2x2x1
jax: 0.10.0
libtpu: 0.0.40
codegen_flags: <defaults>
</compile_context>

<pallas_src>
import functools
import math

import jax
import jax.numpy as jnp
from jax.experimental import pallas as pl
from jax.experimental.pallas import tpu as pltpu

_MIB = 1024 * 1024


def _round_up(x, m):
    return ((x + m - 1) // m) * m


def _cdiv(a, b):
    return (a + b - 1) // b


# ---------------------------------------------------------------------------
# Kernel: fused relu(fc1) -> relu(fc2) -> fc3
# Grid = (batch tiles ["parallel"], fc1 K tiles ["arbitrary" reduction]).
# ---------------------------------------------------------------------------
def _mlp_kernel(x_ref, w1_ref, b1_ref, w2_ref, b2_ref, w3_ref, b3_ref,
                o_ref, acc_ref):
    k = pl.program_id(1)

    @pl.when(k == 0)
    def _():
        acc_ref[...] = jnp.zeros_like(acc_ref)

    # Streamed fc1 partial product: x tile cast to bf16 in-kernel (x streams
    # from HBM in its native dtype), W1 tile arrives pre-cast bf16.
    # f32 accumulation in VMEM scratch.
    acc_ref[...] += jnp.dot(x_ref[...].astype(jnp.bfloat16), w1_ref[...],
                            preferred_element_type=jnp.float32)

    @pl.when(k == pl.num_programs(1) - 1)
    def _():
        h1 = jnp.maximum(acc_ref[...] + b1_ref[...], 0.0)          # relu(fc1)
        h2 = jnp.dot(h1.astype(jnp.bfloat16), w2_ref[...],
                     preferred_element_type=jnp.float32)
        h2 = jnp.maximum(h2 + b2_ref[...], 0.0)                    # relu(fc2)
        h3 = jnp.dot(h2.astype(jnp.bfloat16), w3_ref[...],
                     preferred_element_type=jnp.float32)
        # Output last dim is only 6 lanes; masked stores here are <1-2% of the
        # HBM-bound total, so we keep the natural (tb, 6) out_spec.
        o_ref[...] = (h3 + b3_ref[...]).astype(o_ref.dtype)        # fc3


# ---------------------------------------------------------------------------
# One-time parameter preparation (model-init time, NOT per forward call).
# ---------------------------------------------------------------------------
def prepare_params(w1, b1, w2, b2, w3, b3):
    """Cast weights to bf16 once, pad W1's K dim to a multiple of 128 if
    needed, and reshape (possibly 1-D torch-style) biases to (1, out)."""
    dim = int(w1.shape[0])
    dpad = _round_up(dim, 128)
    w1b = w1.astype(jnp.bfloat16)
    if dpad != dim:
        w1b = jnp.pad(w1b, ((0, dpad - dim), (0, 0)))
    return dict(
        dim=dim,
        w1=w1b,
        b1=jnp.asarray(b1, jnp.float32).reshape(1, -1),
        w2=w2.astype(jnp.bfloat16),
        b2=jnp.asarray(b2, jnp.float32).reshape(1, -1),
        w3=w3.astype(jnp.bfloat16),
        b3=jnp.asarray(b3, jnp.float32).reshape(1, -1),
    )


# ---------------------------------------------------------------------------
# Generation-aware tile / VMEM-limit selection.
# ---------------------------------------------------------------------------
def _select_tiles(B, Dp, H1, O, x_itemsize):
    try:
        cap = int(getattr(pltpu.get_tpu_info(), "vmem_capacity_bytes",
                          64 * _MIB))
    except Exception:
        cap = 64 * _MIB                        # conservative (v7x: 64 MiB/TC)

    # Batch tile: keep >= 2 blocks on the "parallel" axis whenever B allows so
    # both v7x TensorCores get work; cap at 512 to bound VMEM and still cut
    # W1 re-streaming at large B.
    if B <= 8:
        tb = B
    else:
        tb = min(512, _round_up(_cdiv(B, 2), 8))

    # K tile: largest lane-aligned divisor of Dp whose double-buffered
    # streamed tiles (native-dtype x + bf16 W1) fit the per-generation VMEM
    # budget.  Exact division => no K masking and no padding of x.
    fixed = (tb * H1 * 4                       # f32 accumulator
             + 2 * tb * max(O, 128) * 4        # output double-buffer (padded)
             + 2 * _MIB)                       # resident small params + slack
    budget = min(int(cap * 0.75), cap - 16 * _MIB)
    per_k = 2 * (tb * x_itemsize + H1 * 2)     # double-buffered bytes / K elem
    tk_cap = max(128, (budget - fixed) // per_k)
    tk_target = int(min(32768, tk_cap, Dp))

    m = Dp // 128
    d_target = max(1, min(tk_target // 128, m))
    tk = 128
    for d in range(d_target, 0, -1):
        if m % d == 0:
            tk = d * 128
            break

    ws = 2 * tk * (tb * x_itemsize + H1 * 2) + fixed
    vmem_limit = int(min(max(ws + 8 * _MIB, 32 * _MIB), cap - 8 * _MIB))
    vmem_limit = max(vmem_limit, 32 * _MIB)
    return int(tb), int(tk), int(vmem_limit)


# ---------------------------------------------------------------------------
# Forward pass.
# ---------------------------------------------------------------------------
@functools.partial(jax.jit, static_argnames=("dim", "tb", "tk", "vmem_limit"))
def _net_forward_impl(x, w1, b1, w2, b2, w3, b3, *, dim, tb, tk, vmem_limit):
    x2d = x.reshape(-1, dim)            # row-major flatten == torch .view(-1, dim)
    B = x2d.shape[0]
    Dp = w1.shape[0]                    # K dim (padded to a multiple of 128)
    if Dp != dim:
        # Rare fallback: only when dim % 128 != 0 (real model: dim % 128 == 0).
        x2d = jnp.pad(x2d, ((0, 0), (0, Dp - dim)))
    H1 = w1.shape[1]
    H2 = w2.shape[1]
    O = w3.shape[1]

    grid = (_cdiv(B, tb), Dp // tk)
    n_btiles = grid[0]

    cost = pl.CostEstimate(
        flops=2 * B * Dp * H1 + 2 * B * H1 * H2 + 2 * B * H2 * O,
        transcendentals=0,
        bytes_accessed=(B * Dp * x2d.dtype.itemsize          # x streamed once
                        + n_btiles * Dp * H1 * 2              # W1 per batch tile
                        + (H1 * H2 + H2 * O) * 2
                        + (H1 + H2 + O) * 4
                        + B * O * 4),
    )

    out = pl.pallas_call(
        _mlp_kernel,
        out_shape=jax.ShapeDtypeStruct((B, O), x.dtype),
        grid_spec=pltpu.PrefetchScalarGridSpec(
            num_scalar_prefetch=0,
            grid=grid,
            in_specs=[
                pl.BlockSpec((tb, tk), lambda i, k: (i, k)),   # x tile (native)
                pl.BlockSpec((tk, H1), lambda i, k: (k, 0)),   # W1 tile (bf16)
                pl.BlockSpec((1, H1),  lambda i, k: (0, 0)),   # b1 (resident)
                pl.BlockSpec((H1, H2), lambda i, k: (0, 0)),   # W2 (bf16, resident)
                pl.BlockSpec((1, H2),  lambda i, k: (0, 0)),   # b2 (resident)
                pl.BlockSpec((H2, O),  lambda i, k: (0, 0)),   # W3 (bf16, resident)
                pl.BlockSpec((1, O),   lambda i, k: (0, 0)),   # b3 (resident)
            ],
            out_specs=pl.BlockSpec((tb, O), lambda i, k: (i, 0)),
            scratch_shapes=[pltpu.VMEM((tb, H1), jnp.float32)],
        ),
        compiler_params=pltpu.CompilerParams(
            dimension_semantics=("parallel", "arbitrary"),
            vmem_limit_bytes=vmem_limit,
        ),
        cost_estimate=cost,
    )(x2d, w1, b1, w2, b2, w3, b3)
    return out


def net_forward(x, params):
    """x: any shape whose elements flatten to (-1, dim) like torch .view."""
    dim = params["dim"]
    total = math.prod(x.shape)
    assert total % dim == 0, (x.shape, dim)
    B = total // dim
    Dp = int(params["w1"].shape[0])
    H1 = int(params["w1"].shape[1])
    O = int(params["w3"].shape[1])
    tb, tk, vmem_limit = _select_tiles(B, Dp, H1, O,
                                       jnp.dtype(x.dtype).itemsize)
    return _net_forward_impl(x, params["w1"], params["b1"], params["w2"],
                             params["b2"], params["w3"], params["b3"],
                             dim=dim, tb=tb, tk=tk, vmem_limit=vmem_limit)


def _init_linear(key, fan_in, fan_out, dtype=jnp.float32):
    """PyTorch-style init U(-1/sqrt(fan_in), 1/sqrt(fan_in)).
    Weight stored (in, out); bias is torch-style 1-D (out,)."""
    kw, kb = jax.random.split(key)
    bound = 1.0 / jnp.sqrt(jnp.asarray(fan_in, dtype))
    w = jax.random.uniform(kw, (fan_in, fan_out), dtype, -bound, bound)
    b = jax.random.uniform(kb, (fan_out,), dtype, -bound, bound)
    return w, b


if __name__ == "__main__":
    # Small shapes consistent with the forward: NCHW input flattened to (B, D).
    B, C, H, W = 2, 3, 16, 16          # D = 768 here (real module: 512*384*3)
    D = C * H * W

    key = jax.random.PRNGKey(0)
    kx, k1, k2, k3 = jax.random.split(key, 4)

    x = jax.random.normal(kx, (B, C, H, W), jnp.float32)
    w1, b1 = _init_linear(k1, D, 128)
    w2, b2 = _init_linear(k2, 128, 64)
    w3, b3 = _init_linear(k3, 64, 6)

    params = prepare_params(w1, b1, w2, b2, w3, b3)   # one-time prep

    out = net_forward(x, params)
    out = jax.block_until_ready(out)

    # Pure-JAX reference with matching bf16 rounding on the matmul operands
    # (accumulation stays f32, same as the kernel).
    f32 = lambda a: a.astype(jnp.bfloat16).astype(jnp.float32)
    xr = x.reshape(-1, D)
    h1 = jnp.maximum(f32(xr) @ f32(w1) + b1[None, :], 0.0)
    h2 = jnp.maximum(f32(h1) @ f32(w2) + b2[None, :], 0.0)
    ref = f32(h2) @ f32(w3) + b3[None, :]

    assert out.shape == (B, 6), out.shape
    err = jnp.max(jnp.abs(out - ref))
    assert jnp.allclose(out, ref, atol=2e-3, rtol=2e-3), f"max abs err {err}"

    print("KERNEL_OK")
</pallas_src>

<mosaic_0001>
module attributes {stable_mosaic.version = 11 : i64} {
  func.func @_mlp_kernel(%arg0: i32, %arg1: i32, %arg2: memref<2x768xf32, #tpu.memory_space<vmem>>, %arg3: memref<768x128xbf16, #tpu.memory_space<vmem>>, %arg4: memref<1x128xf32, #tpu.memory_space<vmem>>, %arg5: memref<128x64xbf16, #tpu.memory_space<vmem>>, %arg6: memref<1x64xf32, #tpu.memory_space<vmem>>, %arg7: memref<64x6xbf16, #tpu.memory_space<vmem>>, %arg8: memref<1x6xf32, #tpu.memory_space<vmem>>, %arg9: memref<2x6xf32, #tpu.memory_space<vmem>>, %arg10: memref<2x128xf32, #tpu.memory_space<vmem>>) attributes {dimension_semantics = [#tpu.dimension_semantics<parallel>, #tpu.dimension_semantics<arbitrary>], iteration_bounds = array<i64: 1, 1>, scalar_prefetch = 0 : i64, scratch_operands = 1 : i64, tpu.core_type = #tpu.core_type<tc>, window_params = [{transform_indices = @transform_0, window_bounds = array<i64: 2, 768>}, {transform_indices = @transform_1, window_bounds = array<i64: 768, 128>}, {pipeline_mode = #tpu.pipeline_mode<synchronous>, transform_indices = @transform_2, window_bounds = array<i64: 1, 128>}, {pipeline_mode = #tpu.pipeline_mode<synchronous>, transform_indices = @transform_3, window_bounds = array<i64: 128, 64>}, {pipeline_mode = #tpu.pipeline_mode<synchronous>, transform_indices = @transform_4, window_bounds = array<i64: 1, 64>}, {pipeline_mode = #tpu.pipeline_mode<synchronous>, transform_indices = @transform_5, window_bounds = array<i64: 64, 6>}, {pipeline_mode = #tpu.pipeline_mode<synchronous>, transform_indices = @transform_6, window_bounds = array<i64: 1, 6>}, {transform_indices = @transform_7, window_bounds = array<i64: 2, 6>}]} {
    %c0_i32 = arith.constant 0 : i32
    %0 = arith.cmpi eq, %arg1, %c0_i32 : i32
    %1 = arith.extui %0 : i1 to i32
    %c0_i32_0 = arith.constant 0 : i32
    %2 = arith.cmpi ne, %1, %c0_i32_0 : i32
    scf.if %2 {
      %cst_10 = arith.constant 0.000000e+00 : f32
      %13 = vector.broadcast %cst_10 : f32 to vector<2x128xf32>
      %c0_11 = arith.constant 0 : index
      %c0_12 = arith.constant 0 : index
      %14 = vector.load %arg10[%c0_11, %c0_12] : memref<2x128xf32, #tpu.memory_space<vmem>>, vector<2x128xf32>
      tpu.vector_store %arg10[%c0_11, %c0_12], %13 {strides = array<i32>} : memref<2x128xf32, #tpu.memory_space<vmem>>, vector<2x128xf32>,
    } else {
    }
    %c0 = arith.constant 0 : index
    %c0_1 = arith.constant 0 : index
    %3 = vector.load %arg10[%c0, %c0_1] : memref<2x128xf32, #tpu.memory_space<vmem>>, vector<2x128xf32>
    %c0_2 = arith.constant 0 : index
    %c0_3 = arith.constant 0 : index
    %4 = vector.load %arg2[%c0_2, %c0_3] : memref<2x768xf32, #tpu.memory_space<vmem>>, vector<2x768xf32>
    %5 = arith.truncf %4 : vector<2x768xf32> to vector<2x768xbf16>
    %c0_4 = arith.constant 0 : index
    %c0_5 = arith.constant 0 : index
    %6 = vector.load %arg3[%c0_4, %c0_5] : memref<768x128xbf16, #tpu.memory_space<vmem>>, vector<768x128xbf16>
    %cst = arith.constant dense<0.000000e+00> : vector<2x128xf32>
    %7 = tpu.matmul %5, %6, %cst {dimension_numbers = #tpu.dot_dimension_numbers<[1], [0], [0], [1], [0, 0, 1, 1], [], []>} : vector<2x768xbf16>, vector<768x128xbf16>, vector<2x128xf32> -> vector<2x128xf32>
    %8 = arith.addf %3, %7 : vector<2x128xf32>
    %c0_6 = arith.constant 0 : index
    %c0_7 = arith.constant 0 : index
    %9 = vector.load %arg10[%c0_6, %c0_7] : memref<2x128xf32, #tpu.memory_space<vmem>>, vector<2x128xf32>
    tpu.vector_store %arg10[%c0_6, %c0_7], %8 {strides = array<i32>} : memref<2x128xf32, #tpu.memory_space<vmem>>, vector<2x128xf32>,
    %c0_i32_8 = arith.constant 0 : i32
    %10 = arith.cmpi eq, %arg1, %c0_i32_8 : i32
    %11 = arith.extui %10 : i1 to i32
    %c0_i32_9 = arith.constant 0 : i32
    %12 = arith.cmpi ne, %11, %c0_i32_9 : i32
    scf.if %12 {
      %c0_10 = arith.constant 0 : index
      %c0_11 = arith.constant 0 : index
      %13 = vector.load %arg10[%c0_10, %c0_11] : memref<2x128xf32, #tpu.memory_space<vmem>>, vector<2x128xf32>
      %c0_12 = arith.constant 0 : index
      %c0_13 = arith.constant 0 : index
      %14 = vector.load %arg4[%c0_12, %c0_13] : memref<1x128xf32, #tpu.memory_space<vmem>>, vector<1x128xf32>
      %15 = vector.broadcast %14 : vector<1x128xf32> to vector<2x128xf32>
      %16 = arith.addf %13, %15 : vector<2x128xf32>
      %cst_14 = arith.constant 0.000000e+00 : f32
      %17 = vector.broadcast %cst_14 : f32 to vector<2x128xf32>
      %18 = arith.maximumf %16, %17 : vector<2x128xf32>
      %19 = arith.truncf %18 : vector<2x128xf32> to vector<2x128xbf16>
      %c0_15 = arith.constant 0 : index
      %c0_16 = arith.constant 0 : index
      %20 = vector.load %arg5[%c0_15, %c0_16] : memref<128x64xbf16, #tpu.memory_space<vmem>>, vector<128x64xbf16>
      %cst_17 = arith.constant dense<0.000000e+00> : vector<2x64xf32>
      %21 = tpu.matmul %19, %20, %cst_17 {dimension_numbers = #tpu.dot_dimension_numbers<[1], [0], [0], [1], [0, 0, 1, 1], [], []>} : vector<2x128xbf16>, vector<128x64xbf16>, vector<2x64xf32> -> vector<2x64xf32>
      %c0_18 = arith.constant 0 : index
      %c0_19 = arith.constant 0 : index
      %22 = vector.load %arg6[%c0_18, %c0_19] : memref<1x64xf32, #tpu.memory_space<vmem>>, vector<1x64xf32>
      %23 = vector.broadcast %22 : vector<1x64xf32> to vector<2x64xf32>
      %24 = arith.addf %21, %23 : vector<2x64xf32>
      %cst_20 = arith.constant 0.000000e+00 : f32
      %25 = vector.broadcast %cst_20 : f32 to vector<2x64xf32>
      %26 = arith.maximumf %24, %25 : vector<2x64xf32>
      %27 = arith.truncf %26 : vector<2x64xf32> to vector<2x64xbf16>
      %c0_21 = arith.constant 0 : index
      %c0_22 = arith.constant 0 : index
      %28 = vector.load %arg7[%c0_21, %c0_22] : memref<64x6xbf16, #tpu.memory_space<vmem>>, vector<64x6xbf16>
      %cst_23 = arith.constant dense<0.000000e+00> : vector<2x6xf32>
      %29 = tpu.matmul %27, %28, %cst_23 {dimension_numbers = #tpu.dot_dimension_numbers<[1], [0], [0], [1], [0, 0, 1, 1], [], []>} : vector<2x64xbf16>, vector<64x6xbf16>, vector<2x6xf32> -> vector<2x6xf32>
      %c0_24 = arith.constant 0 : index
      %c0_25 = arith.constant 0 : index
      %30 = vector.load %arg8[%c0_24, %c0_25] : memref<1x6xf32, #tpu.memory_space<vmem>>, vector<1x6xf32>
      %31 = vector.broadcast %30 : vector<1x6xf32> to vector<2x6xf32>
      %32 = arith.addf %29, %31 : vector<2x6xf32>
      %c0_26 = arith.constant 0 : index
      %c0_27 = arith.constant 0 : index
      %33 = vector.load %arg9[%c0_26, %c0_27] : memref<2x6xf32, #tpu.memory_space<vmem>>, vector<2x6xf32>
      tpu.vector_store %arg9[%c0_26, %c0_27], %32 {strides = array<i32>} : memref<2x6xf32, #tpu.memory_space<vmem>>, vector<2x6xf32>,
    } else {
    }
    return
  }
  func.func @transform_0(%arg0: i32, %arg1: i32) -> (i32, i32) {
    %c0_i32 = arith.constant 0 : i32
    return %arg0, %arg1 : i32, i32
  }
  func.func @transform_1(%arg0: i32, %arg1: i32) -> (i32, i32) {
    %c0_i32 = arith.constant 0 : i32
    %c0_i32_0 = arith.constant 0 : i32
    return %arg1, %c0_i32 : i32, i32
  }
  func.func @transform_2(%arg0: i32, %arg1: i32) -> (i32, i32) {
    %c0_i32 = arith.constant 0 : i32
    %c0_i32_0 = arith.constant 0 : i32
    %c0_i32_1 = arith.constant 0 : i32
    return %c0_i32, %c0_i32_0 : i32, i32
  }
  func.func @transform_3(%arg0: i32, %arg1: i32) -> (i32, i32) {
    %c0_i32 = arith.constant 0 : i32
    %c0_i32_0 = arith.constant 0 : i32
    %c0_i32_1 = arith.constant 0 : i32
    return %c0_i32, %c0_i32_0 : i32, i32
  }
  func.func @transform_4(%arg0: i32, %arg1: i32) -> (i32, i32) {
    %c0_i32 = arith.constant 0 : i32
    %c0_i32_0 = arith.constant 0 : i32
    %c0_i32_1 = arith.constant 0 : i32
    return %c0_i32, %c0_i32_0 : i32, i32
  }
  func.func @transform_5(%arg0: i32, %arg1: i32) -> (i32, i32) {
    %c0_i32 = arith.constant 0 : i32
    %c0_i32_0 = arith.constant 0 : i32
    %c0_i32_1 = arith.constant 0 : i32
    return %c0_i32, %c0_i32_0 : i32, i32
  }
  func.func @transform_6(%arg0: i32, %arg1: i32) -> (i32, i32) {
    %c0_i32 = arith.constant 0 : i32
    %c0_i32_0 = arith.constant 0 : i32
    %c0_i32_1 = arith.constant 0 : i32
    return %c0_i32, %c0_i32_0 : i32, i32
  }
  func.func @transform_7(%arg0: i32, %arg1: i32) -> (i32, i32) {
    %c0_i32 = arith.constant 0 : i32
    %c0_i32_0 = arith.constant 0 : i32
    return %arg0, %c0_i32 : i32, i32
  }
}

</mosaic_0001>

<llo_original>
// kernel: _net_forward_impl.1
$region0: #{_net_forward_impl.1}
  #allocation0 [shape = 'u32[]', space=smem, size = 0x4, offset = 0x4, fixed_abs, tag = 'smem constant byte address 0x4 - core index']
  #allocation1 [shape = 'u32[144,128]{1,0:T(1,128)}', space=vmem, size = 0x12000, scoped, tag = 'internal scratch']
  #allocation2 [shape = 'f32[2,128]{1,0:T(2,128)}', space=vmem, size = 0x400, scoped, tag = 'scratch operand']
  %s0 = inlined_call_operand.vmem [shape: f32[2,768], index: 0, kind: input, shape index: {}]
  %s1 = inlined_call_operand.hbm [shape: bf16[768,128], index: 1, kind: input, shape index: {}]
  %s2 = inlined_call_operand.vmem [shape: f32[1,128], index: 2, kind: input, shape index: {}]
  %s3 = inlined_call_operand.vmem [shape: bf16[128,64], index: 3, kind: input, shape index: {}]
  %s4 = inlined_call_operand.vmem [shape: f32[1,64], index: 4, kind: input, shape index: {}]
  %s5 = inlined_call_operand.vmem [shape: bf16[64,6], index: 5, kind: input, shape index: {}]
  %s6 = inlined_call_operand.vmem [shape: f32[1,6], index: 6, kind: input, shape index: {}]
  %s7 = inlined_call_operand.hbm [shape: f32[2,6], index: 7, kind: output, shape index: {}]
  %s8 = sld [smem:[#allocation0]]
  $region50: #{_net_forward_impl.1} parent=0
    _
  %s10 = ssub.s32 1, %s8
  %s11 = scalar_select 0, %s10, %s8
  $region1: #{_net_forward_impl.1} parent=0
    #allocation3 [shape = 'u8[196608]{0}', space=vmem, size = 0x30000, scoped, tag = 'input window, operand 1, single buffered']
    #allocation4 [shape = 's32[1]{0}', space=sflag, size = 0x4, scoped, tag = 'scoped memory for _net_forward_impl.1']
    #allocation5 [shape = 's32[1]{0}', space=sflag, size = 0x4, scoped, tag = 'scoped memory for _net_forward_impl.1']
    #allocation6 [shape = 'u8[1024]{0}', space=vmem, size = 0x400, scoped, tag = 'output window, operand 0, single buffered']
    %12 = vsyncpa [#allocation4], 0
    %13 = vsyncpa [#allocation5], 0
    // Predicated region
    $region2: #{_net_forward_impl.1} parent=1 // pred_check
      _
    $region3: #{_net_forward_impl.1} parent=1 // pred_check_branch
      %15 = sbr.rel (0) target = $region5
    $region4: #{_net_forward_impl.1} parent=1 // pred_region
      _
    $region5: #{_net_forward_impl.1} parent=1 // pred_fallthru
      _
    // Predicated region
    $region6: #{_net_forward_impl.1} parent=1 // pred_check
      _
    $region7: #{_net_forward_impl.1} parent=1 // pred_check_branch
      %17 = sbr.rel (0) target = $region9
    $region8: #{_net_forward_impl.1} parent=1 // pred_region
      %s19 = ssub.s32 6144, 6144
      %20 = vsyncadd [#allocation4], %s19
      %s21 = sshll.u32 [#allocation3], 4
      %s22 = int_to_ptr.vmem [resolvable:$true] %s21
      %27 = dma.hbm_to_vmem [thread:$0]  %s1, 6144, %s22, [#allocation4], 64, 64, 4
    $region9: #{_net_forward_impl.1} parent=1 // pred_fallthru
      _
    // Predicated region
    $region10: #{_net_forward_impl.1} parent=1 // pred_check
      _
    $region11: #{_net_forward_impl.1} parent=1 // pred_check_branch
      %29 = sbr.rel (0) target = $region13
    $region12: #{_net_forward_impl.1} parent=1 // pred_region
      _
    $region13: #{_net_forward_impl.1} parent=1 // pred_fallthru
      _
    // Predicated region
    $region14: #{_net_forward_impl.1} parent=1 // pred_check
      _
    $region15: #{_net_forward_impl.1} parent=1 // pred_check_branch
      %31 = sbr.rel (0) target = $region17
    $region16: #{_net_forward_impl.1} parent=1 // pred_region
      _
    $region17: #{_net_forward_impl.1} parent=1 // pred_fallthru
      _
    // Predicated region
    $region18: #{_net_forward_impl.1} parent=1 // pred_check
      _
    $region19: #{_net_forward_impl.1} parent=1 // pred_check_branch
      %33 = sbr.rel (0) target = $region21
    $region20: #{_net_forward_impl.1} parent=1 // pred_region
      _
    $region21: #{_net_forward_impl.1} parent=1 // pred_fallthru
      _
    // Predicated region
    $region22: #{_net_forward_impl.1} parent=1 // pred_check
      _
    $region23: #{_net_forward_impl.1} parent=1 // pred_check_branch
      %35 = sbr.rel (0) target = $region25
    $region24: #{_net_forward_impl.1} parent=1 // pred_region
      _
    $region25: #{_net_forward_impl.1} parent=1 // pred_fallthru
      _
    // Predicated region
    $region26: #{_net_forward_impl.1} parent=1 // pred_check
      _
    $region27: #{_net_forward_impl.1} parent=1 // pred_check_branch
      %37 = sbr.rel (0) target = $region29
    $region28: #{_net_forward_impl.1} parent=1 // pred_region
      _
    $region29: #{_net_forward_impl.1} parent=1 // pred_fallthru
      _
    // Predicated region
    $region30: #{_net_forward_impl.1} parent=1 // pred_check
      _
    $region31: #{_net_forward_impl.1} parent=1 // pred_check_branch
      %39 = sbr.rel (0) target = $region33
    $region32: #{_net_forward_impl.1} parent=1 // pred_region
      %40 = dma.done [#allocation4], 6144
    $region33: #{_net_forward_impl.1} parent=1 // pred_fallthru
      _
    %p42 = scmp.eq.s32.totalorder 0, 0
    // Predicated region
    $region34: #{_net_forward_impl.1} parent=1 // pred_check
      %p43 = pneg %p42
    $region35: #{_net_forward_impl.1} parent=1 // pred_check_branch
      %45 = sbr.rel (%p43) target = $region37
    $region36: #{_net_forward_impl.1} parent=1 // pred_region
      %46 = vst [vmem:[#allocation2] sm:$0x3] 0.0
    $region37: #{_net_forward_impl.1} parent=1 // pred_fallthru
      _
    %v47 = vld [vmem:[#allocation2] sm:$0x3]
    %v48 = vld [vmem:[%s0] sm:$0xff]
    %v49 = vld [vmem:[%s0 + $0x8] sm:$0xf]
    %v52 = vcombine.high %v48, %v48
    %v54 = vunpack.c.l.s4 1983009808
    %v55 = vunpack.c.0.s8 %v54
    %v56 = vlaneseq
    %v57 = vshrl.u32 %v56, 7
    %v58 = vsub.s32 %v55, %v57
    %v59 = vrot.slane %v48, %v58
    %v61 = vunpack.c.l.s4 1983009808
    %v62 = vunpack.c.0.s8 %v61
    %v63 = vlaneseq
    %v64 = vshrl.u32 %v63, 7
    %v65 = vsub.s32 %v62, %v64
    %v66 = vrot.slane %v52, %v65
    %v67 = vcombine.high %v59, %v59
    %v68 = vcombine.high %v66, %v66
    %v70 = vunpack.c.l.s4 1983009808
    %v71 = vunpack.c.0.s8 %v70
    %v72 = vlaneseq
    %v73 = vshrl.u32 %v72, 7
    %v74 = vsub.s32 %v71, %v73
    %v75 = vrot.slane %v49, %v74
    %v76 = vcombine.high %v75, %v75
    %v83 = vpack.c.bf16 %v59, %v59
    %v84 = vpack.c.bf16 %v67, %v67
    %v85 = vpack.c.bf16 %v66, %v66
    %v86 = vpack.c.bf16 %v68, %v68
    %v87 = vpack.c.bf16 %v75, %v75
    %v88 = vpack.c.bf16 %v76, %v76
    %v89 = vld [vmem:[#allocation3] sm:$0xf]
    %v90 = vld [vmem:[#allocation3 + $0x4] sm:$0xf]
    %v91 = vld [vmem:[#allocation3 + $0x8] sm:$0xf]
    %v92 = vld [vmem:[#allocation3 + $0xc] sm:$0xf]
    %v93 = vld [vmem:[#allocation3 + $0x10] sm:$0xf]
    %v94 = vld [vmem:[#allocation3 + $0x14] sm:$0xf]
    %v95 = vld [vmem:[#allocation3 + $0x18] sm:$0xf]
    %v96 = vld [vmem:[#allocation3 + $0x1c] sm:$0xf]
    %v97 = vld [vmem:[#allocation3 + $0x20] sm:$0xf]
    %v98 = vld [vmem:[#allocation3 + $0x24] sm:$0xf]
    %v99 = vld [vmem:[#allocation3 + $0x28] sm:$0xf]
    %v100 = vld [vmem:[#allocation3 + $0x2c] sm:$0xf]
    %v101 = vld [vmem:[#allocation3 + $0x30] sm:$0xf]
    %v102 = vld [vmem:[#allocation3 + $0x34] sm:$0xf]
    %v103 = vld [vmem:[#allocation3 + $0x38] sm:$0xf]
    %v104 = vld [vmem:[#allocation3 + $0x3c] sm:$0xf]
    %v105 = vld [vmem:[#allocation3 + $0x40] sm:$0xf]
    %v106 = vld [vmem:[#allocation3 + $0x44] sm:$0xf]
    %v107 = vld [vmem:[#allocation3 + $0x48] sm:$0xf]
    %v108 = vld [vmem:[#allocation3 + $0x4c] sm:$0xf]
    %v109 = vld [vmem:[#allocation3 + $0x50] sm:$0xf]
    %v110 = vld [vmem:[#allocation3 + $0x54] sm:$0xf]
    %v111 = vld [vmem:[#allocation3 + $0x58] sm:$0xf]
    %v112 = vld [vmem:[#allocation3 + $0x5c] sm:$0xf]
    %v113 = vld [vmem:[#allocation3 + $0x60] sm:$0xf]
    %v114 = vld [vmem:[#allocation3 + $0x64] sm:$0xf]
    %v115 = vld [vmem:[#allocation3 + $0x68] sm:$0xf]
    %v116 = vld [vmem:[#allocation3 + $0x6c] sm:$0xf]
    %v117 = vld [vmem:[#allocation3 + $0x70] sm:$0xf]
    %v118 = vld [vmem:[#allocation3 + $0x74] sm:$0xf]
    %v119 = vld [vmem:[#allocation3 + $0x78] sm:$0xf]
    %v120 = vld [vmem:[#allocation3 + $0x7c] sm:$0xf]
    %v121 = vld [vmem:[#allocation3 + $0x80] sm:$0xf]
    %v122 = vld [vmem:[#allocation3 + $0x84] sm:$0xf]
    %v123 = vld [vmem:[#allocation3 + $0x88] sm:$0xf]
    %v124 = vld [vmem:[#allocation3 + $0x8c] sm:$0xf]
    %v125 = vld [vmem:[#allocation3 + $0x90] sm:$0xf]
    %v126 = vld [vmem:[#allocation3 + $0x94] sm:$0xf]
    %v127 = vld [vmem:[#allocation3 + $0x98] sm:$0xf]
    %v128 = vld [vmem:[#allocation3 + $0x9c] sm:$0xf]
    %v129 = vld [vmem:[#allocation3 + $0xa0] sm:$0xf]
    %v130 = vld [vmem:[#allocation3 + $0xa4] sm:$0xf]
    %v131 = vld [vmem:[#allocation3 + $0xa8] sm:$0xf]
    %v132 = vld [vmem:[#allocation3 + $0xac] sm:$0xf]
    %v133 = vld [vmem:[#allocation3 + $0xb0] sm:$0xf]
    %v134 = vld [vmem:[#allocation3 + $0xb4] sm:$0xf]
    %v135 = vld [vmem:[#allocation3 + $0xb8] sm:$0xf]
    %v136 = vld [vmem:[#allocation3 + $0xbc] sm:$0xf]
    %v137 = vld [vmem:[#allocation3 + $0xc0] sm:$0xf]
    %v138 = vld [vmem:[#allocation3 + $0xc4] sm:$0xf]
    %v139 = vld [vmem:[#allocation3 + $0xc8] sm:$0xf]
    %v140 = vld [vmem:[#allocation3 + $0xcc] sm:$0xf]
    %v141 = vld [vmem:[#allocation3 + $0xd0] sm:$0xf]
    %v142 = vld [vmem:[#allocation3 + $0xd4] sm:$0xf]
    %v143 = vld [vmem:[#allocation3 + $0xd8] sm:$0xf]
    %v144 = vld [vmem:[#allocation3 + $0xdc] sm:$0xf]
    %v145 = vld [vmem:[#allocation3 + $0xe0] sm:$0xf]
    %v146 = vld [vmem:[#allocation3 + $0xe4] sm:$0xf]
    %v147 = vld [vmem:[#allocation3 + $0xe8] sm:$0xf]
    %v148 = vld [vmem:[#allocation3 + $0xec] sm:$0xf]
    %v149 = vld [vmem:[#allocation3 + $0xf0] sm:$0xf]
    %v150 = vld [vmem:[#allocation3 + $0xf4] sm:$0xf]
    %v151 = vld [vmem:[#allocation3 + $0xf8] sm:$0xf]
    %v152 = vld [vmem:[#allocation3 + $0xfc] sm:$0xf]
    %v153 = vld [vmem:[#allocation3 + $0x100] sm:$0xf]
    %v154 = vld [vmem:[#allocation3 + $0x104] sm:$0xf]
    %v155 = vld [vmem:[#allocation3 + $0x108] sm:$0xf]
    %v156 = vld [vmem:[#allocation3 + $0x10c] sm:$0xf]
    %v157 = vld [vmem:[#allocation3 + $0x110] sm:$0xf]
    %v158 = vld [vmem:[#allocation3 + $0x114] sm:$0xf]
    %v159 = vld [vmem:[#allocation3 + $0x118] sm:$0xf]
    %v160 = vld [vmem:[#allocation3 + $0x11c] sm:$0xf]
    %v161 = vld [vmem:[#allocation3 + $0x120] sm:$0xf]
    %v162 = vld [vmem:[#allocation3 + $0x124] sm:$0xf]
    %v163 = vld [vmem:[#allocation3 + $0x128] sm:$0xf]
    %v164 = vld [vmem:[#allocation3 + $0x12c] sm:$0xf]
    %v165 = vld [vmem:[#allocation3 + $0x130] sm:$0xf]
    %v166 = vld [vmem:[#allocation3 + $0x134] sm:$0xf]
    %v167 = vld [vmem:[#allocation3 + $0x138] sm:$0xf]
    %v168 = vld [vmem:[#allocation3 + $0x13c] sm:$0xf]
    %v169 = vld [vmem:[#allocation3 + $0x140] sm:$0xf]
    %v170 = vld [vmem:[#allocation3 + $0x144] sm:$0xf]
    %v171 = vld [vmem:[#allocation3 + $0x148] sm:$0xf]
    %v172 = vld [vmem:[#allocation3 + $0x14c] sm:$0xf]
    %v173 = vld [vmem:[#allocation3 + $0x150] sm:$0xf]
    %v174 = vld [vmem:[#allocation3 + $0x154] sm:$0xf]
    %v175 = vld [vmem:[#allocation3 + $0x158] sm:$0xf]
    %v176 = vld [vmem:[#allocation3 + $0x15c] sm:$0xf]
    %v177 = vld [vmem:[#allocation3 + $0x160] sm:$0xf]
    %v178 = vld [vmem:[#allocation3 + $0x164] sm:$0xf]
    %v179 = vld [vmem:[#allocation3 + $0x168] sm:$0xf]
    %v180 = vld [vmem:[#allocation3 + $0x16c] sm:$0xf]
    %v181 = vld [vmem:[#allocation3 + $0x170] sm:$0xf]
    %v182 = vld [vmem:[#allocation3 + $0x174] sm:$0xf]
    %v183 = vld [vmem:[#allocation3 + $0x178] sm:$0xf]
    %v184 = vld [vmem:[#allocation3 + $0x17c] sm:$0xf]
    %v281 = vunpack.c.l.b16 %v89
    %v282 = vunpack.c.l.b16 %v90
    %v283 = vunpack.c.l.b16 %v91
    %v284 = vunpack.c.l.b16 %v92
    %v285 = vunpack.c.l.b16 %v93
    %v286 = vunpack.c.l.b16 %v94
    %v287 = vunpack.c.l.b16 %v95
    %v288 = vunpack.c.l.b16 %v96
    %v289 = vunpack.c.l.b16 %v97
    %v290 = vunpack.c.l.b16 %v98
    %v291 = vunpack.c.l.b16 %v99
    %v292 = vunpack.c.l.b16 %v100
    %v293 = vunpack.c.l.b16 %v101
    %v294 = vunpack.c.l.b16 %v102
    %v295 = vunpack.c.l.b16 %v103
    %v296 = vunpack.c.l.b16 %v104
    %v297 = vunpack.c.l.b16 %v105
    %v298 = vunpack.c.l.b16 %v106
    %v299 = vunpack.c.l.b16 %v107
    %v300 = vunpack.c.l.b16 %v108
    %v301 = vunpack.c.l.b16 %v109
    %v302 = vunpack.c.l.b16 %v110
    %v303 = vunpack.c.l.b16 %v111
    %v304 = vunpack.c.l.b16 %v112
    %v305 = vunpack.c.l.b16 %v113
    %v306 = vunpack.c.l.b16 %v114
    %v307 = vunpack.c.l.b16 %v115
    %v308 = vunpack.c.l.b16 %v116
    %v309 = vunpack.c.l.b16 %v117
    %v310 = vunpack.c.l.b16 %v118
    %v311 = vunpack.c.l.b16 %v119
    %v312 = vunpack.c.l.b16 %v120
    %v313 = vunpack.c.l.b16 %v121
    %v314 = vunpack.c.l.b16 %v122
    %v315 = vunpack.c.l.b16 %v123
    %v316 = vunpack.c.l.b16 %v124
    %v317 = vunpack.c.l.b16 %v125
    %v318 = vunpack.c.l.b16 %v126
    %v319 = vunpack.c.l.b16 %v127
    %v320 = vunpack.c.l.b16 %v128
    %v321 = vunpack.c.l.b16 %v129
    %v322 = vunpack.c.l.b16 %v130
    %v323 = vunpack.c.l.b16 %v131
    %v324 = vunpack.c.l.b16 %v132
    %v325 = vunpack.c.l.b16 %v133
    %v326 = vunpack.c.l.b16 %v134
    %v327 = vunpack.c.l.b16 %v135
    %v328 = vunpack.c.l.b16 %v136
    %v329 = vunpack.c.l.b16 %v137
    %v330 = vunpack.c.l.b16 %v138
    %v331 = vunpack.c.l.b16 %v139
    %v332 = vunpack.c.l.b16 %v140
    %v333 = vunpack.c.l.b16 %v141
    %v334 = vunpack.c.l.b16 %v142
    %v335 = vunpack.c.l.b16 %v143
    %v336 = vunpack.c.l.b16 %v144
    %v337 = vunpack.c.l.b16 %v145
    %v338 = vunpack.c.l.b16 %v146
    %v339 = vunpack.c.l.b16 %v147
    %v340 = vunpack.c.l.b16 %v148
    %v341 = vunpack.c.l.b16 %v149
    %v342 = vunpack.c.l.b16 %v150
    %v343 = vunpack.c.l.b16 %v151
    %v344 = vunpack.c.l.b16 %v152
    %v345 = vunpack.c.l.b16 %v153
    %v346 = vunpack.c.l.b16 %v154
    %v347 = vunpack.c.l.b16 %v155
    %v348 = vunpack.c.l.b16 %v156
    %v349 = vunpack.c.l.b16 %v157
    %v350 = vunpack.c.l.b16 %v158
    %v351 = vunpack.c.l.b16 %v159
    %v352 = vunpack.c.l.b16 %v160
    %v353 = vunpack.c.l.b16 %v161
    %v354 = vunpack.c.l.b16 %v162
    %v355 = vunpack.c.l.b16 %v163
    %v356 = vunpack.c.l.b16 %v164
    %v357 = vunpack.c.l.b16 %v165
    %v358 = vunpack.c.l.b16 %v166
    %v359 = vunpack.c.l.b16 %v167
    %v360 = vunpack.c.l.b16 %v168
    %v361 = vunpack.c.l.b16 %v169
    %v362 = vunpack.c.l.b16 %v170
    %v363 = vunpack.c.l.b16 %v171
    %v364 = vunpack.c.l.b16 %v172
    %v365 = vunpack.c.l.b16 %v173
    %v366 = vunpack.c.l.b16 %v174
    %v367 = vunpack.c.l.b16 %v175
    %v368 = vunpack.c.l.b16 %v176
    %v369 = vunpack.c.l.b16 %v177
    %v370 = vunpack.c.l.b16 %v178
    %v371 = vunpack.c.l.b16 %v179
    %v372 = vunpack.c.l.b16 %v180
    %v373 = vunpack.c.l.b16 %v181
    %v374 = vunpack.c.l.b16 %v182
    %v375 = vunpack.c.l.b16 %v183
    %v376 = vunpack.c.l.b16 %v184
    %v377 = vpack.c.b16 %v282, %v281
    %v378 = vpack.c.b16 %v284, %v283
    %v379 = vpack.c.b16 %v286, %v285
    %v380 = vpack.c.b16 %v288, %v287
    %v381 = vpack.c.b16 %v290, %v289
    %v382 = vpack.c.b16 %v292, %v291
    %v383 = vpack.c.b16 %v294, %v293
    %v384 = vpack.c.b16 %v296, %v295
    %v385 = vpack.c.b16 %v298, %v297
    %v386 = vpack.c.b16 %v300, %v299
    %v387 = vpack.c.b16 %v302, %v301
    %v388 = vpack.c.b16 %v304, %v303
    %v389 = vpack.c.b16 %v306, %v305
    %v390 = vpack.c.b16 %v308, %v307
    %v391 = vpack.c.b16 %v310, %v309
    %v392 = vpack.c.b16 %v312, %v311
    %v393 = vpack.c.b16 %v314, %v313
    %v394 = vpack.c.b16 %v316, %v315
    %v395 = vpack.c.b16 %v318, %v317
    %v396 = vpack.c.b16 %v320, %v319
    %v397 = vpack.c.b16 %v322, %v321
    %v398 = vpack.c.b16 %v324, %v323
    %v399 = vpack.c.b16 %v326, %v325
    %v400 = vpack.c.b16 %v328, %v327
    %v401 = vpack.c.b16 %v330, %v329
    %v402 = vpack.c.b16 %v332, %v331
    %v403 = vpack.c.b16 %v334, %v333
    %v404 = vpack.c.b16 %v336, %v335
    %v405 = vpack.c.b16 %v338, %v337
    %v406 = vpack.c.b16 %v340, %v339
    %v407 = vpack.c.b16 %v342, %v341
    %v408 = vpack.c.b16 %v344, %v343
    %v409 = vpack.c.b16 %v346, %v345
    %v410 = vpack.c.b16 %v348, %v347
    %v411 = vpack.c.b16 %v350, %v349
    %v412 = vpack.c.b16 %v352, %v351
    %v413 = vpack.c.b16 %v354, %v353
    %v414 = vpack.c.b16 %v356, %v355
    %v415 = vpack.c.b16 %v358, %v357
    %v416 = vpack.c.b16 %v360, %v359
    %v417 = vpack.c.b16 %v362, %v361
    %v418 = vpack.c.b16 %v364, %v363
    %v419 = vpack.c.b16 %v366, %v365
    %v420 = vpack.c.b16 %v368, %v367
    %v421 = vpack.c.b16 %v370, %v369
    %v422 = vpack.c.b16 %v372, %v371
    %v423 = vpack.c.b16 %v374, %v373
    %v424 = vpack.c.b16 %v376, %v375
    %473 = vmatprep.subr.bf16.mxu0 0
    %474 = vmatpush1.bf16.msra.mxu0 %v377
    %475 = vmatprep.subr.bf16.mxu0 0
    %476 = vmatpush1.bf16.msra.mxu0 %v378
    %477 = vmatprep.subr.bf16.mxu0 0
    %478 = vmatpush1.bf16.msra.mxu0 %v379
    %479 = vmatprep.subr.bf16.mxu0 0
    %480 = vmatpush1.bf16.msra.mxu0 %v380
    %481 = vmatprep.subr.bf16.mxu0 0
    %482 = vmatpush1.bf16.msra.mxu0 %v381
    %483 = vmatprep.subr.bf16.mxu0 0
    %484 = vmatpush1.bf16.msra.mxu0 %v382
    %485 = vmatprep.subr.bf16.mxu0 0
    %486 = vmatpush1.bf16.msra.mxu0 %v383
    %487 = vmatprep.subr.bf16.mxu0 0
    %488 = vmatpush1.bf16.msra.mxu0 %v384
    %489 = vmatprep.subr.bf16.mxu0 0
    %490 = vmatpush1.bf16.msra.mxu0 %v385
    %491 = vmatprep.subr.bf16.mxu0 0
    %492 = vmatpush1.bf16.msra.mxu0 %v386
    %493 = vmatprep.subr.bf16.mxu0 0
    %494 = vmatpush1.bf16.msra.mxu0 %v387
    %495 = vmatprep.subr.bf16.mxu0 0
    %496 = vmatpush1.bf16.msra.mxu0 %v388
    %497 = vmatprep.subr.bf16.mxu0 0
    %498 = vmatpush1.bf16.msra.mxu0 %v389
    %499 = vmatprep.subr.bf16.mxu0 0
    %500 = vmatpush1.bf16.msra.mxu0 %v390
    %501 = vmatprep.subr.bf16.mxu0 0
    %502 = vmatpush1.bf16.msra.mxu0 %v391
    %503 = vmatprep.subr.bf16.mxu0 0
    %504 = vmatpush1.bf16.msra.mxu0 %v392
    %505 = vmatprep.mubr.bf16.mxu0 %v84
    %506 = vmatmul.mubr.bf16.gmra.mrb[0].mxu0 %v83
    %v507 = vpop.f32.mrb[0].mxu0
    %v508 = vadd.f32 0.0, %v507
    %v509 = vpop.f32.mrb[0].mxu0
    %v510 = vpop.f32.mrb[0].mxu0
    %v511 = vpop.f32.mrb[0].mxu0
    %512 = vdwg.mxu0
    %513 = vmatprep.subr.bf16.mxu0 0
    %514 = vmatpush1.bf16.msra.mxu0 %v393
    %515 = vmatprep.subr.bf16.mxu0 0
    %516 = vmatpush1.bf16.msra.mxu0 %v394
    %517 = vmatprep.subr.bf16.mxu0 0
    %518 = vmatpush1.bf16.msra.mxu0 %v395
    %519 = vmatprep.subr.bf16.mxu0 0
    %520 = vmatpush1.bf16.msra.mxu0 %v396
    %521 = vmatprep.subr.bf16.mxu0 0
    %522 = vmatpush1.bf16.msra.mxu0 %v397
    %523 = vmatprep.subr.bf16.mxu0 0
    %524 = vmatpush1.bf16.msra.mxu0 %v398
    %525 = vmatprep.subr.bf16.mxu0 0
    %526 = vmatpush1.bf16.msra.mxu0 %v399
    %527 = vmatprep.subr.bf16.mxu0 0
    %528 = vmatpush1.bf16.msra.mxu0 %v400
    %529 = vmatprep.subr.bf16.mxu0 0
    %530 = vmatpush1.bf16.msra.mxu0 %v401
    %531 = vmatprep.subr.bf16.mxu0 0
    %532 = vmatpush1.bf16.msra.mxu0 %v402
    %533 = vmatprep.subr.bf16.mxu0 0
    %534 = vmatpush1.bf16.msra.mxu0 %v403
    %535 = vmatprep.subr.bf16.mxu0 0
    %536 = vmatpush1.bf16.msra.mxu0 %v404
    %537 = vmatprep.subr.bf16.mxu0 0
    %538 = vmatpush1.bf16.msra.mxu0 %v405
    %539 = vmatprep.subr.bf16.mxu0 0
    %540 = vmatpush1.bf16.msra.mxu0 %v406
    %541 = vmatprep.subr.bf16.mxu0 0
    %542 = vmatpush1.bf16.msra.mxu0 %v407
    %543 = vmatprep.subr.bf16.mxu0 0
    %544 = vmatpush1.bf16.msra.mxu0 %v408
    %545 = vmatprep.mubr.bf16.mxu0 %v86
    %546 = vmatmul.mubr.bf16.gmra.mrb[0].mxu0 %v85
    %v547 = vpop.f32.mrb[0].mxu0
    %v548 = vadd.f32 %v508, %v547
    %v549 = vpop.f32.mrb[0].mxu0
    %v550 = vpop.f32.mrb[0].mxu0
    %v551 = vpop.f32.mrb[0].mxu0
    %552 = vdwg.mxu0
    %553 = vmatprep.subr.bf16.mxu0 0
    %554 = vmatpush1.bf16.msra.mxu0 %v409
    %555 = vmatprep.subr.bf16.mxu0 0
    %556 = vmatpush1.bf16.msra.mxu0 %v410
    %557 = vmatprep.subr.bf16.mxu0 0
    %558 = vmatpush1.bf16.msra.mxu0 %v411
    %559 = vmatprep.subr.bf16.mxu0 0
    %560 = vmatpush1.bf16.msra.mxu0 %v412
    %561 = vmatprep.subr.bf16.mxu0 0
    %562 = vmatpush1.bf16.msra.mxu0 %v413
    %563 = vmatprep.subr.bf16.mxu0 0
    %564 = vmatpush1.bf16.msra.mxu0 %v414
    %565 = vmatprep.subr.bf16.mxu0 0
    %566 = vmatpush1.bf16.msra.mxu0 %v415
    %567 = vmatprep.subr.bf16.mxu0 0
    %568 = vmatpush1.bf16.msra.mxu0 %v416
    %569 = vmatprep.subr.bf16.mxu0 0
    %570 = vmatpush1.bf16.msra.mxu0 %v417
    %571 = vmatprep.subr.bf16.mxu0 0
    %572 = vmatpush1.bf16.msra.mxu0 %v418
    %573 = vmatprep.subr.bf16.mxu0 0
    %574 = vmatpush1.bf16.msra.mxu0 %v419
    %575 = vmatprep.subr.bf16.mxu0 0
    %576 = vmatpush1.bf16.msra.mxu0 %v420
    %577 = vmatprep.subr.bf16.mxu0 0
    %578 = vmatpush1.bf16.msra.mxu0 %v421
    %579 = vmatprep.subr.bf16.mxu0 0
    %580 = vmatpush1.bf16.msra.mxu0 %v422
    %581 = vmatprep.subr.bf16.mxu0 0
    %582 = vmatpush1.bf16.msra.mxu0 %v423
    %583 = vmatprep.subr.bf16.mxu0 0
    %584 = vmatpush1.bf16.msra.mxu0 %v424
    %585 = vmatprep.mubr.bf16.mxu0 %v88
    %586 = vmatmul.mubr.bf16.gmra.mrb[0].mxu0 %v87
    %v587 = vpop.f32.mrb[0].mxu0
    %v588 = vadd.f32 %v548, %v587
    %v589 = vpop.f32.mrb[0].mxu0
    %v590 = vpop.f32.mrb[0].mxu0
    %v591 = vpop.f32.mrb[0].mxu0
    %592 = vdwg.mxu0
    %v593 = vadd.f32 %v47, %v588
    %594 = vst [vmem:[#allocation2] sm:$0x3] %v593
    // Predicated region
    $region38: #{_net_forward_impl.1} parent=1 // pred_check
      %p595 = pneg %p42
    $region39: #{_net_forward_impl.1} parent=1 // pred_check_branch
      %597 = sbr.rel (%p595) target = $region41
    $region40: #{_net_forward_impl.1} parent=1 // pred_region
      %v598 = vld [vmem:[#allocation2] sm:$0x3]
      %v599 = vld [vmem:[%s2] sm:$0x1]
      %v601 = vlaneseq
      %v602 = vshrl.u32 %v601, 7
      %v603 = vsub.s32 0, %v602
      %v604 = vrot.slane %v599, %v603
      %v606 = vadd.f32 %v598, %v604
      %v607 = vmax.f32 %v606, 0.0
      %v608 = vpack.c.bf16 %v607, %v607
      %v609 = vld [vmem:[%s3] sm:$0xf]
      %v610 = vld [vmem:[%s3 + $0x4] sm:$0xf]
      %v611 = vld [vmem:[%s3 + $0x8] sm:$0xf]
      %v612 = vld [vmem:[%s3 + $0xc] sm:$0xf]
      %v613 = vld [vmem:[%s3 + $0x10] sm:$0xf]
      %v614 = vld [vmem:[%s3 + $0x14] sm:$0xf]
      %v615 = vld [vmem:[%s3 + $0x18] sm:$0xf]
      %v616 = vld [vmem:[%s3 + $0x1c] sm:$0xf]
      %v617 = vld [vmem:[%s3 + $0x20] sm:$0xf]
      %v618 = vld [vmem:[%s3 + $0x24] sm:$0xf]
      %v619 = vld [vmem:[%s3 + $0x28] sm:$0xf]
      %v620 = vld [vmem:[%s3 + $0x2c] sm:$0xf]
      %v621 = vld [vmem:[%s3 + $0x30] sm:$0xf]
      %v622 = vld [vmem:[%s3 + $0x34] sm:$0xf]
      %v623 = vld [vmem:[%s3 + $0x38] sm:$0xf]
      %v624 = vld [vmem:[%s3 + $0x3c] sm:$0xf]
      %v625 = vld [vmem:[%s4] sm:$0x1]
      %v627 = vlaneseq
      %v628 = vshrl.u32 %v627, 7
      %v629 = vsub.s32 0, %v628
      %v630 = vrot.slane %v625, %v629
      %v648 = vunpack.c.l.b16 %v609
      %v649 = vunpack.c.l.b16 %v610
      %v650 = vunpack.c.l.b16 %v611
      %v651 = vunpack.c.l.b16 %v612
      %v652 = vunpack.c.l.b16 %v613
      %v653 = vunpack.c.l.b16 %v614
      %v654 = vunpack.c.l.b16 %v615
      %v655 = vunpack.c.l.b16 %v616
      %v656 = vunpack.c.l.b16 %v617
      %v657 = vunpack.c.l.b16 %v618
      %v658 = vunpack.c.l.b16 %v619
      %v659 = vunpack.c.l.b16 %v620
      %v660 = vunpack.c.l.b16 %v621
      %v661 = vunpack.c.l.b16 %v622
      %v662 = vunpack.c.l.b16 %v623
      %v663 = vunpack.c.l.b16 %v624
      %v664 = vpack.c.b16 %v649, %v648
      %v665 = vpack.c.b16 %v651, %v650
      %v666 = vpack.c.b16 %v653, %v652
      %v667 = vpack.c.b16 %v655, %v654
      %v668 = vpack.c.b16 %v657, %v656
      %v669 = vpack.c.b16 %v659, %v658
      %v670 = vpack.c.b16 %v661, %v660
      %v671 = vpack.c.b16 %v663, %v662
      %680 = vmatprep.subr.bf16.mxu0 0
      %681 = vmatpush1.bf16.msra.mxu0 %v664
      %682 = vmatprep.subr.bf16.mxu0 0
      %683 = vmatpush1.bf16.msra.mxu0 %v665
      %684 = vmatprep.subr.bf16.mxu0 0
      %685 = vmatpush1.bf16.msra.mxu0 %v666
      %686 = vmatprep.subr.bf16.mxu0 0
      %687 = vmatpush1.bf16.msra.mxu0 %v667
      %688 = vmatprep.subr.bf16.mxu0 0
      %689 = vmatpush1.bf16.msra.mxu0 %v668
      %690 = vmatprep.subr.bf16.mxu0 0
      %691 = vmatpush1.bf16.msra.mxu0 %v669
      %692 = vmatprep.subr.bf16.mxu0 0
      %693 = vmatpush1.bf16.msra.mxu0 %v670
      %694 = vmatprep.subr.bf16.mxu0 0
      %695 = vmatpush1.bf16.msra.mxu0 %v671
      %696 = vmatprep.subr.bf16.mxu0 0
      %697 = vmatpush1.bf16.msra.mxu0 0
      %698 = vmatprep.subr.bf16.mxu0 0
      %699 = vmatpush1.bf16.msra.mxu0 0
      %700 = vmatprep.subr.bf16.mxu0 0
      %701 = vmatpush1.bf16.msra.mxu0 0
      %702 = vmatprep.subr.bf16.mxu0 0
      %703 = vmatpush1.bf16.msra.mxu0 0
      %704 = vmatprep.subr.bf16.mxu0 0
      %705 = vmatpush1.bf16.msra.mxu0 0
      %706 = vmatprep.subr.bf16.mxu0 0
      %707 = vmatpush1.bf16.msra.mxu0 0
      %708 = vmatprep.subr.bf16.mxu0 0
      %709 = vmatpush1.bf16.msra.mxu0 0
      %710 = vmatprep.subr.bf16.mxu0 0
      %711 = vmatpush1.bf16.msra.mxu0 0
      %712 = vmatprep.mubr.bf16.mxu0 0
      %713 = vmatmul.mubr.bf16.gmra.mrb[0].mxu0 %v608
      %v714 = vpop.f32.mrb[0].mxu0
      %v715 = vadd.f32 %v630, %v714
      %v716 = vpop.f32.mrb[0].mxu0
      %v717 = vpop.f32.mrb[0].mxu0
      %v718 = vpop.f32.mrb[0].mxu0
      %719 = vdwg.mxu0
      %v720 = vmax.f32 %v715, 0.0
      %v721 = vpack.c.bf16 %v720, %v720
      %v722 = vld [vmem:[%s5] sm:$0xf]
      %v723 = vld [vmem:[%s5 + $0x4] sm:$0xf]
      %v724 = vld [vmem:[%s5 + $0x8] sm:$0xf]
      %v725 = vld [vmem:[%s5 + $0xc] sm:$0xf]
      %v726 = vld [vmem:[%s5 + $0x10] sm:$0xf]
      %v727 = vld [vmem:[%s5 + $0x14] sm:$0xf]
      %v728 = vld [vmem:[%s5 + $0x18] sm:$0xf]
      %v729 = vld [vmem:[%s5 + $0x1c] sm:$0xf]
      %v730 = vld [vmem:[%s6] sm:$0x1]
      %v732 = vlaneseq
      %v733 = vshrl.u32 %v732, 7
      %v734 = vsub.s32 0, %v733
      %v735 = vrot.slane %v730, %v734
      %v745 = vunpack.c.l.b16 %v722
      %v746 = vunpack.c.l.b16 %v723
      %v747 = vunpack.c.l.b16 %v724
      %v748 = vunpack.c.l.b16 %v725
      %v749 = vunpack.c.l.b16 %v726
      %v750 = vunpack.c.l.b16 %v727
      %v751 = vunpack.c.l.b16 %v728
      %v752 = vunpack.c.l.b16 %v729
      %v753 = vpack.c.b16 %v746, %v745
      %v754 = vpack.c.b16 %v748, %v747
      %v755 = vpack.c.b16 %v750, %v749
      %v756 = vpack.c.b16 %v752, %v751
      %vm761 = vcmask 523264
      %v763 = vsel %vm761, %v721, 0
      %765 = vmatprep.subr.bf16.mxu0 0
      %766 = vmatpush1.bf16.msra.mxu0 %v753
      %767 = vmatprep.subr.bf16.mxu0 0
      %768 = vmatpush1.bf16.msra.mxu0 %v754
      %769 = vmatprep.subr.bf16.mxu0 0
      %770 = vmatpush1.bf16.msra.mxu0 %v755
      %771 = vmatprep.subr.bf16.mxu0 0
      %772 = vmatpush1.bf16.msra.mxu0 %v756
      %773 = vmatprep.subr.bf16.mxu0 0
      %774 = vmatpush1.bf16.msra.mxu0 0
      %775 = vmatprep.subr.bf16.mxu0 0
      %776 = vmatpush1.bf16.msra.mxu0 0
      %777 = vmatprep.subr.bf16.mxu0 0
      %778 = vmatpush1.bf16.msra.mxu0 0
      %779 = vmatprep.subr.bf16.mxu0 0
      %780 = vmatpush1.bf16.msra.mxu0 0
      %781 = vmatprep.subr.bf16.mxu0 0
      %782 = vmatpush1.bf16.msra.mxu0 0
      %783 = vmatprep.subr.bf16.mxu0 0
      %784 = vmatpush1.bf16.msra.mxu0 0
      %785 = vmatprep.subr.bf16.mxu0 0
      %786 = vmatpush1.bf16.msra.mxu0 0
      %787 = vmatprep.subr.bf16.mxu0 0
      %788 = vmatpush1.bf16.msra.mxu0 0
      %789 = vmatprep.subr.bf16.mxu0 0
      %790 = vmatpush1.bf16.msra.mxu0 0
      %791 = vmatprep.subr.bf16.mxu0 0
      %792 = vmatpush1.bf16.msra.mxu0 0
      %793 = vmatprep.subr.bf16.mxu0 0
      %794 = vmatpush1.bf16.msra.mxu0 0
      %795 = vmatprep.subr.bf16.mxu0 0
      %796 = vmatpush1.bf16.msra.mxu0 0
      %797 = vmatprep.mubr.bf16.mxu0 0
      %798 = vmatmul.mubr.bf16.gmra.mrb[0].mxu0 %v763
      %v799 = vpop.f32.mrb[0].mxu0
      %v800 = vadd.f32 %v735, %v799
      %v801 = vpop.f32.mrb[0].mxu0
      %v802 = vpop.f32.mrb[0].mxu0
      %v803 = vpop.f32.mrb[0].mxu0
      %804 = vdwg.mxu0
      %vm805 = vcmask 41984
      %806 = vst.msk [vmem:[#allocation6] sm:$0x3] %vm805, %v800
    $region41: #{_net_forward_impl.1} parent=1 // pred_fallthru
      _
    // Predicated region
    $region42: #{_net_forward_impl.1} parent=1 // pred_check
      _
    $region43: #{_net_forward_impl.1} parent=1 // pred_check_branch
      %808 = sbr.rel (0) target = $region45
    $region44: #{_net_forward_impl.1} parent=1 // pred_region
      %s810 = ssub.s32 32, 32
      %811 = vsyncadd [#allocation5], %s810
      %s813 = sshll.u32 [#allocation6], 4
      %s814 = int_to_ptr.vmem [resolvable:$true] %s813
      %816 = dma.vmem_to_hbm [thread:$0]  %s814, 32, %s7, [#allocation5]
    $region45: #{_net_forward_impl.1} parent=1 // pred_fallthru
      _
    // Predicated region
    $region46: #{_net_forward_impl.1} parent=1 // pred_check
      _
    $region47: #{_net_forward_impl.1} parent=1 // pred_check_branch
      %818 = sbr.rel (0) target = $region49
    $region48: #{_net_forward_impl.1} parent=1 // pred_region
      %819 = dma.done [#allocation5], 32
    $region49: #{_net_forward_impl.1} parent=1 // pred_fallthru
      _
    %820 = vsyncpa [#allocation4], 1
    %821 = vsyncpa [#allocation5], 1

</llo_original>
